<compile_context>
chip_gen: v7x
topology: tpu7x:2x2x1
jax: 0.10.0
libtpu: 0.0.40
codegen_flags: <defaults>
</compile_context>

<pallas_src>
import jax
import jax.numpy as jnp
import numpy as np
from jax.experimental import pallas as pl
from jax.experimental.pallas import tpu as pltpu


def _cdiv(a: int, b: int) -> int:
    return -(-a // b)


def _round_up(x: int, m: int) -> int:
    return ((x + m - 1) // m) * m


def _make_mlp_kernel(depth: int, compute_dtype):
    """Feature-major fused-MLP kernel for a fixed (static) depth.

    Ref order: xT, W0, b0, ..., W_{depth-1}, b_{depth-1}, Wf, bf(SMEM), out
    Shapes   : xT (d, TB); Wi (H_p, prev_p); bi (H_p, 1); Wf (sub, H_p);
               out (1, TB)  -- batch on lanes, features on sublanes.
    """

    def kernel(x_ref, *refs):
        out_ref = refs[-1]
        bf_ref = refs[-2]            # (1, 1) f32 scalar in SMEM
        wf_ref = refs[-3]            # (sub, H_p), compute_dtype, row 0 valid

        h = x_ref[...]               # (d, TB), compute_dtype
        for i in range(depth):
            w = refs[2 * i][...]         # (H_p, prev_p), compute_dtype
            b = refs[2 * i + 1][...]     # (H_p, 1) f32
            z = jnp.dot(w, h, preferred_element_type=jnp.float32)  # (H_p, TB)
            h = jnp.maximum(z + b, 0.0).astype(compute_dtype)      # f32 VPU, one cast

        out = jnp.dot(wf_ref[...], h, preferred_element_type=jnp.float32)  # (sub, TB)
        out_ref[...] = out[0:1, :] + bf_ref[0, 0]    # lane-dense (1, TB) store

    return kernel


def deepnn_forward_pallas(x, weights, biases, *, block_b: int = 512,
                          use_bf16: bool = True):
    """Fused DeepNN forward pass.

    x:       (B, d) float32
    weights: [(d, H), (H, H) * (depth-1), (H, 1)]  stored (in_dim, out_dim),
             so the math is h @ W + b (== torch x @ W.T + b).
    biases:  [(1, H), ..., (1, 1)]
    returns: jnp.squeeze of the (B,) predictions (matches torch .squeeze()).
    """
    depth = len(weights) - 1
    B, d = x.shape
    H = weights[0].shape[1]

    LANE = 128
    w_dtype = jnp.bfloat16 if use_bf16 else jnp.float32
    sub = 16 if use_bf16 else 8          # sublane granularity for w_dtype
    H_p = _round_up(H, sub)

    # ---- parameters: torch (out, in) orientation, zero padded, compute dtype ----
    flat_params = []
    prev, prev_p = d, d                  # feature (K) dim is NOT 128-padded
    for i in range(depth):
        w, b = weights[i], biases[i]
        wp = jnp.zeros((H_p, prev_p), w_dtype).at[:H, :prev].set(
            w.T.astype(w_dtype))
        bp = jnp.zeros((H_p, 1), jnp.float32).at[:H, 0].set(
            b.reshape(-1).astype(jnp.float32))
        flat_params += [wp, bp]
        prev, prev_p = H, H_p

    wfp = jnp.zeros((sub, H_p), w_dtype).at[0, :H].set(
        weights[-1].reshape(-1).astype(w_dtype))
    bf = biases[-1].reshape(1, 1).astype(jnp.float32)     # scalar -> SMEM

    # ---- batch tiling: minimal padding, lane-dense TB (multiple of 128) ----
    num_tiles = _cdiv(B, max(block_b, LANE))
    TB = _round_up(_cdiv(B, num_tiles), LANE)
    B_pad = num_tiles * TB

    x_dtype = w_dtype                    # DMA x in the MXU operand dtype
    xT = jnp.zeros((d, B_pad), x_dtype).at[:, :B].set(x.T.astype(x_dtype))

    # ---- VMEM budget (generation-aware cap; estimate includes bf16 temps) ----
    try:
        cap = int(0.9 * pltpu.get_tpu_info().vmem_capacity_bytes)
    except Exception:
        cap = 56 << 20                   # conservative: below v7x's 64 MiB
    param_bytes = sum(int(p.size) * p.dtype.itemsize
                      for p in flat_params + [wfp])
    act_bytes = 6 * TB * max(H_p, d) * 4                     # f32 z/h + bf16 copies + scratch
    io_bytes = 2 * d * TB * jnp.dtype(x_dtype).itemsize + 2 * TB * 4

    def _run(single_buffer_params: bool):
        def resident(shape):
            if single_buffer_params:
                return pl.BlockSpec(shape, lambda i: (0, 0),
                                    pipeline_mode=pl.Buffered(1))
            return pl.BlockSpec(shape, lambda i: (0, 0))

        in_specs = [pl.BlockSpec((d, TB), lambda i: (0, i))]      # x tile
        for p in flat_params:
            in_specs.append(resident(p.shape))                    # resident W/b
        in_specs.append(resident(wfp.shape))                      # resident Wf
        in_specs.append(pl.BlockSpec((1, 1), lambda i: (0, 0),
                                     memory_space=pltpu.MemorySpace.SMEM))
        out_specs = pl.BlockSpec((1, TB), lambda i: (0, i))       # packed output

        buf = 1 if single_buffer_params else 2
        needed = buf * param_bytes + act_bytes + io_bytes + (2 << 20)
        vmem_limit = int(min(max(needed, 32 << 20), cap))

        return pl.pallas_call(
            _make_mlp_kernel(depth, w_dtype),
            out_shape=jax.ShapeDtypeStruct((1, B_pad), jnp.float32),
            grid_spec=pltpu.PrefetchScalarGridSpec(
                num_scalar_prefetch=0,
                grid=(num_tiles,),
                in_specs=in_specs,
                out_specs=out_specs,
            ),
            compiler_params=pltpu.CompilerParams(
                dimension_semantics=("parallel",),
                vmem_limit_bytes=vmem_limit,
            ),
        )(xT, *flat_params, wfp, bf)

    try:
        out = _run(True)        # single-buffered resident parameters
    except Exception:
        out = _run(False)       # fallback if pl.Buffered(1) is unsupported

    return jnp.squeeze(out[0, :B])   # (B,) for B>1, scalar for B==1 (torch .squeeze())


def init_deepnn_params(key, d, hidden_size, depth, mode="special"):
    """Deterministic init matching DeepNN.__init__ ('special' mode).

    Returns (weights, biases) with weights stored (in_dim, out_dim).
    """
    weights, biases = [], []
    prev_dim = d
    gain_relu = np.sqrt(2.0)  # nn.init.calculate_gain('relu')

    for _ in range(depth):
        key, sub = jax.random.split(key)
        if mode == "special":
            std = gain_relu / np.sqrt(prev_dim)
            w = std * jax.random.normal(sub, (prev_dim, hidden_size), jnp.float32)
        elif mode == "mup_pennington":
            std = 1.0 / np.sqrt(prev_dim)
            w = std * jax.random.normal(sub, (prev_dim, hidden_size), jnp.float32)
        else:
            # xavier_uniform approximation (deterministic, not bit-exact vs torch)
            limit = np.sqrt(6.0 / (prev_dim + hidden_size))
            w = jax.random.uniform(sub, (prev_dim, hidden_size), jnp.float32,
                                   -limit, limit)
        weights.append(w)
        biases.append(jnp.zeros((1, hidden_size), jnp.float32))
        prev_dim = hidden_size

    key, sub = jax.random.split(key)
    if mode == "special":
        std_f = 0.01
    elif mode == "mup_pennington":
        std_f = 1.0 / np.sqrt(prev_dim)
    else:
        std_f = np.sqrt(6.0 / (prev_dim + 1))
    wf = std_f * jax.random.normal(sub, (prev_dim, 1), jnp.float32)
    weights.append(wf)
    biases.append(jnp.zeros((1, 1), jnp.float32))

    return weights, biases


def deepnn_forward_ref(x, weights, biases):
    """Pure-JAX f32 reference for verification."""
    h = x
    depth = len(weights) - 1
    for i in range(depth):
        h = jnp.maximum(h @ weights[i] + biases[i], 0.0)
    out = h @ weights[-1] + biases[-1]
    return jnp.squeeze(out)


if __name__ == "__main__":
    # Small shapes consistent with the module: d=16, hidden_size=32, depth=3, batch=8
    B, d, hidden_size, depth = 8, 16, 32, 3

    key = jax.random.PRNGKey(0)
    key, xk = jax.random.split(key)
    x = jax.random.normal(xk, (B, d), jnp.float32)

    weights, biases = init_deepnn_params(key, d, hidden_size, depth, mode="special")

    y = deepnn_forward_pallas(x, weights, biases)
    y = jax.block_until_ready(y)

    y_ref = deepnn_forward_ref(x, weights, biases)
    # bf16 MXU operands (f32 accumulation) -> loosened tolerance vs f32 ref.
    np.testing.assert_allclose(np.asarray(y), np.asarray(y_ref),
                               rtol=2e-2, atol=1e-2)

    print("KERNEL_OK")
</pallas_src>

<mosaic_0001>
module attributes {stable_mosaic.version = 11 : i64} {
  func.func @kernel(%arg0: i32, %arg1: memref<16x128xbf16, #tpu.memory_space<vmem>>, %arg2: memref<32x16xbf16, #tpu.memory_space<vmem>>, %arg3: memref<32x1xf32, #tpu.memory_space<vmem>>, %arg4: memref<32x32xbf16, #tpu.memory_space<vmem>>, %arg5: memref<32x1xf32, #tpu.memory_space<vmem>>, %arg6: memref<32x32xbf16, #tpu.memory_space<vmem>>, %arg7: memref<32x1xf32, #tpu.memory_space<vmem>>, %arg8: memref<16x32xbf16, #tpu.memory_space<vmem>>, %arg9: memref<1x1xf32, #tpu.memory_space<smem>>, %arg10: memref<1x128xf32, #tpu.memory_space<vmem>>) attributes {dimension_semantics = [#tpu.dimension_semantics<parallel>], iteration_bounds = array<i64: 1>, scalar_prefetch = 0 : i64, scratch_operands = 0 : i64, tpu.core_type = #tpu.core_type<tc>, window_params = [{transform_indices = @transform_0, window_bounds = array<i64: 16, 128>}, {pipeline_mode = #tpu.pipeline_mode<synchronous>, transform_indices = @transform_1, window_bounds = array<i64: 32, 16>}, {pipeline_mode = #tpu.pipeline_mode<synchronous>, transform_indices = @transform_2, window_bounds = array<i64: 32, 1>}, {pipeline_mode = #tpu.pipeline_mode<synchronous>, transform_indices = @transform_3, window_bounds = array<i64: 32, 32>}, {pipeline_mode = #tpu.pipeline_mode<synchronous>, transform_indices = @transform_4, window_bounds = array<i64: 32, 1>}, {pipeline_mode = #tpu.pipeline_mode<synchronous>, transform_indices = @transform_5, window_bounds = array<i64: 32, 32>}, {pipeline_mode = #tpu.pipeline_mode<synchronous>, transform_indices = @transform_6, window_bounds = array<i64: 32, 1>}, {pipeline_mode = #tpu.pipeline_mode<synchronous>, transform_indices = @transform_7, window_bounds = array<i64: 16, 32>}, {transform_indices = @transform_8, window_bounds = array<i64: 1, 1>}, {transform_indices = @transform_9, window_bounds = array<i64: 1, 128>}]} {
    %c0 = arith.constant 0 : index
    %c0_0 = arith.constant 0 : index
    %0 = vector.load %arg1[%c0, %c0_0] : memref<16x128xbf16, #tpu.memory_space<vmem>>, vector<16x128xbf16>
    %c0_1 = arith.constant 0 : index
    %c0_2 = arith.constant 0 : index
    %1 = vector.load %arg2[%c0_1, %c0_2] : memref<32x16xbf16, #tpu.memory_space<vmem>>, vector<32x16xbf16>
    %c0_3 = arith.constant 0 : index
    %c0_4 = arith.constant 0 : index
    %2 = vector.load %arg3[%c0_3, %c0_4] : memref<32x1xf32, #tpu.memory_space<vmem>>, vector<32x1xf32>
    %cst = arith.constant dense<0.000000e+00> : vector<32x128xf32>
    %3 = tpu.matmul %1, %0, %cst {dimension_numbers = #tpu.dot_dimension_numbers<[1], [0], [0], [1], [0, 0, 1, 1], [], []>} : vector<32x16xbf16>, vector<16x128xbf16>, vector<32x128xf32> -> vector<32x128xf32>
    %4 = vector.broadcast %2 : vector<32x1xf32> to vector<32x128xf32>
    %5 = arith.addf %3, %4 : vector<32x128xf32>
    %cst_5 = arith.constant 0.000000e+00 : f32
    %6 = vector.broadcast %cst_5 : f32 to vector<32x128xf32>
    %7 = arith.maximumf %5, %6 : vector<32x128xf32>
    %8 = arith.truncf %7 : vector<32x128xf32> to vector<32x128xbf16>
    %c0_6 = arith.constant 0 : index
    %c0_7 = arith.constant 0 : index
    %9 = vector.load %arg4[%c0_6, %c0_7] : memref<32x32xbf16, #tpu.memory_space<vmem>>, vector<32x32xbf16>
    %c0_8 = arith.constant 0 : index
    %c0_9 = arith.constant 0 : index
    %10 = vector.load %arg5[%c0_8, %c0_9] : memref<32x1xf32, #tpu.memory_space<vmem>>, vector<32x1xf32>
    %cst_10 = arith.constant dense<0.000000e+00> : vector<32x128xf32>
    %11 = tpu.matmul %9, %8, %cst_10 {dimension_numbers = #tpu.dot_dimension_numbers<[1], [0], [0], [1], [0, 0, 1, 1], [], []>} : vector<32x32xbf16>, vector<32x128xbf16>, vector<32x128xf32> -> vector<32x128xf32>
    %12 = vector.broadcast %10 : vector<32x1xf32> to vector<32x128xf32>
    %13 = arith.addf %11, %12 : vector<32x128xf32>
    %cst_11 = arith.constant 0.000000e+00 : f32
    %14 = vector.broadcast %cst_11 : f32 to vector<32x128xf32>
    %15 = arith.maximumf %13, %14 : vector<32x128xf32>
    %16 = arith.truncf %15 : vector<32x128xf32> to vector<32x128xbf16>
    %c0_12 = arith.constant 0 : index
    %c0_13 = arith.constant 0 : index
    %17 = vector.load %arg6[%c0_12, %c0_13] : memref<32x32xbf16, #tpu.memory_space<vmem>>, vector<32x32xbf16>
    %c0_14 = arith.constant 0 : index
    %c0_15 = arith.constant 0 : index
    %18 = vector.load %arg7[%c0_14, %c0_15] : memref<32x1xf32, #tpu.memory_space<vmem>>, vector<32x1xf32>
    %cst_16 = arith.constant dense<0.000000e+00> : vector<32x128xf32>
    %19 = tpu.matmul %17, %16, %cst_16 {dimension_numbers = #tpu.dot_dimension_numbers<[1], [0], [0], [1], [0, 0, 1, 1], [], []>} : vector<32x32xbf16>, vector<32x128xbf16>, vector<32x128xf32> -> vector<32x128xf32>
    %20 = vector.broadcast %18 : vector<32x1xf32> to vector<32x128xf32>
    %21 = arith.addf %19, %20 : vector<32x128xf32>
    %cst_17 = arith.constant 0.000000e+00 : f32
    %22 = vector.broadcast %cst_17 : f32 to vector<32x128xf32>
    %23 = arith.maximumf %21, %22 : vector<32x128xf32>
    %24 = arith.truncf %23 : vector<32x128xf32> to vector<32x128xbf16>
    %c0_18 = arith.constant 0 : index
    %c0_19 = arith.constant 0 : index
    %25 = vector.load %arg8[%c0_18, %c0_19] : memref<16x32xbf16, #tpu.memory_space<vmem>>, vector<16x32xbf16>
    %cst_20 = arith.constant dense<0.000000e+00> : vector<16x128xf32>
    %26 = tpu.matmul %25, %24, %cst_20 {dimension_numbers = #tpu.dot_dimension_numbers<[1], [0], [0], [1], [0, 0, 1, 1], [], []>} : vector<16x32xbf16>, vector<32x128xbf16>, vector<16x128xf32> -> vector<16x128xf32>
    %27 = vector.extract_strided_slice %26 {offsets = [0, 0], sizes = [1, 128], strides = [1, 1]} : vector<16x128xf32> to vector<1x128xf32>
    %c0_21 = arith.constant 0 : index
    %c0_22 = arith.constant 0 : index
    %28 = memref.load %arg9[%c0_21, %c0_22] : memref<1x1xf32, #tpu.memory_space<smem>>
    %29 = vector.broadcast %28 : f32 to vector<1x128xf32>
    %30 = arith.addf %27, %29 : vector<1x128xf32>
    %c0_23 = arith.constant 0 : index
    %c0_24 = arith.constant 0 : index
    %31 = vector.load %arg10[%c0_23, %c0_24] : memref<1x128xf32, #tpu.memory_space<vmem>>, vector<1x128xf32>
    tpu.vector_store %arg10[%c0_23, %c0_24], %30 {strides = array<i32>} : memref<1x128xf32, #tpu.memory_space<vmem>>, vector<1x128xf32>,
    return
  }
  func.func @transform_0(%arg0: i32) -> (i32, i32) {
    %c0_i32 = arith.constant 0 : i32
    %c0_i32_0 = arith.constant 0 : i32
    return %c0_i32, %arg0 : i32, i32
  }
  func.func @transform_1(%arg0: i32) -> (i32, i32) {
    %c0_i32 = arith.constant 0 : i32
    %c0_i32_0 = arith.constant 0 : i32
    %c0_i32_1 = arith.constant 0 : i32
    return %c0_i32, %c0_i32_0 : i32, i32
  }
  func.func @transform_2(%arg0: i32) -> (i32, i32) {
    %c0_i32 = arith.constant 0 : i32
    %c0_i32_0 = arith.constant 0 : i32
    %c0_i32_1 = arith.constant 0 : i32
    return %c0_i32, %c0_i32_0 : i32, i32
  }
  func.func @transform_3(%arg0: i32) -> (i32, i32) {
    %c0_i32 = arith.constant 0 : i32
    %c0_i32_0 = arith.constant 0 : i32
    %c0_i32_1 = arith.constant 0 : i32
    return %c0_i32, %c0_i32_0 : i32, i32
  }
  func.func @transform_4(%arg0: i32) -> (i32, i32) {
    %c0_i32 = arith.constant 0 : i32
    %c0_i32_0 = arith.constant 0 : i32
    %c0_i32_1 = arith.constant 0 : i32
    return %c0_i32, %c0_i32_0 : i32, i32
  }
  func.func @transform_5(%arg0: i32) -> (i32, i32) {
    %c0_i32 = arith.constant 0 : i32
    %c0_i32_0 = arith.constant 0 : i32
    %c0_i32_1 = arith.constant 0 : i32
    return %c0_i32, %c0_i32_0 : i32, i32
  }
  func.func @transform_6(%arg0: i32) -> (i32, i32) {
    %c0_i32 = arith.constant 0 : i32
    %c0_i32_0 = arith.constant 0 : i32
    %c0_i32_1 = arith.constant 0 : i32
    return %c0_i32, %c0_i32_0 : i32, i32
  }
  func.func @transform_7(%arg0: i32) -> (i32, i32) {
    %c0_i32 = arith.constant 0 : i32
    %c0_i32_0 = arith.constant 0 : i32
    %c0_i32_1 = arith.constant 0 : i32
    return %c0_i32, %c0_i32_0 : i32, i32
  }
  func.func @transform_8(%arg0: i32) -> (i32, i32) {
    %c0_i32 = arith.constant 0 : i32
    %c0_i32_0 = arith.constant 0 : i32
    %c0_i32_1 = arith.constant 0 : i32
    return %c0_i32, %c0_i32_0 : i32, i32
  }
  func.func @transform_9(%arg0: i32) -> (i32, i32) {
    %c0_i32 = arith.constant 0 : i32
    %c0_i32_0 = arith.constant 0 : i32
    return %c0_i32, %arg0 : i32, i32
  }
}

module attributes {stable_mosaic.version = 11 : i64} {
  func.func @kernel(%arg0: i32, %arg1: memref<16x128xbf16, #tpu.memory_space<vmem>>, %arg2: memref<32x16xbf16, #tpu.memory_space<vmem>>, %arg3: memref<32x1xf32, #tpu.memory_space<vmem>>, %arg4: memref<32x32xbf16, #tpu.memory_space<vmem>>, %arg5: memref<32x1xf32, #tpu.memory_space<vmem>>, %arg6: memref<32x32xbf16, #tpu.memory_space<vmem>>, %arg7: memref<32x1xf32, #tpu.memory_space<vmem>>, %arg8: memref<16x32xbf16, #tpu.memory_space<vmem>>, %arg9: memref<1x1xf32, #tpu.memory_space<smem>>, %arg10: memref<1x128xf32, #tpu.memory_space<vmem>>) attributes {dimension_semantics = [#tpu.dimension_semantics<parallel>], iteration_bounds = array<i64: 1>, scalar_prefetch = 0 : i64, scratch_operands = 0 : i64, tpu.core_type = #tpu.core_type<tc>, window_params = [{transform_indices = @transform_0, window_bounds = array<i64: 16, 128>}, {pipeline_mode = #tpu.pipeline_mode<synchronous>, transform_indices = @transform_1, window_bounds = array<i64: 32, 16>}, {pipeline_mode = #tpu.pipeline_mode<synchronous>, transform_indices = @transform_2, window_bounds = array<i64: 32, 1>}, {pipeline_mode = #tpu.pipeline_mode<synchronous>, transform_indices = @transform_3, window_bounds = array<i64: 32, 32>}, {pipeline_mode = #tpu.pipeline_mode<synchronous>, transform_indices = @transform_4, window_bounds = array<i64: 32, 1>}, {pipeline_mode = #tpu.pipeline_mode<synchronous>, transform_indices = @transform_5, window_bounds = array<i64: 32, 32>}, {pipeline_mode = #tpu.pipeline_mode<synchronous>, transform_indices = @transform_6, window_bounds = array<i64: 32, 1>}, {pipeline_mode = #tpu.pipeline_mode<synchronous>, transform_indices = @transform_7, window_bounds = array<i64: 16, 32>}, {transform_indices = @transform_8, window_bounds = array<i64: 1, 1>}, {transform_indices = @transform_9, window_bounds = array<i64: 1, 128>}]} {
    %c0 = arith.constant 0 : index
    %c0_0 = arith.constant 0 : index
    %0 = vector.load %arg1[%c0, %c0_0] : memref<16x128xbf16, #tpu.memory_space<vmem>>, vector<16x128xbf16>
    %c0_1 = arith.constant 0 : index
    %c0_2 = arith.constant 0 : index
    %1 = vector.load %arg2[%c0_1, %c0_2] : memref<32x16xbf16, #tpu.memory_space<vmem>>, vector<32x16xbf16>
    %c0_3 = arith.constant 0 : index
    %c0_4 = arith.constant 0 : index
    %2 = vector.load %arg3[%c0_3, %c0_4] : memref<32x1xf32, #tpu.memory_space<vmem>>, vector<32x1xf32>
    %cst = arith.constant dense<0.000000e+00> : vector<32x128xf32>
    %3 = tpu.matmul %1, %0, %cst {dimension_numbers = #tpu.dot_dimension_numbers<[1], [0], [0], [1], [0, 0, 1, 1], [], []>} : vector<32x16xbf16>, vector<16x128xbf16>, vector<32x128xf32> -> vector<32x128xf32>
    %4 = vector.broadcast %2 : vector<32x1xf32> to vector<32x128xf32>
    %5 = arith.addf %3, %4 : vector<32x128xf32>
    %cst_5 = arith.constant 0.000000e+00 : f32
    %6 = vector.broadcast %cst_5 : f32 to vector<32x128xf32>
    %7 = arith.maximumf %5, %6 : vector<32x128xf32>
    %8 = arith.truncf %7 : vector<32x128xf32> to vector<32x128xbf16>
    %c0_6 = arith.constant 0 : index
    %c0_7 = arith.constant 0 : index
    %9 = vector.load %arg4[%c0_6, %c0_7] : memref<32x32xbf16, #tpu.memory_space<vmem>>, vector<32x32xbf16>
    %c0_8 = arith.constant 0 : index
    %c0_9 = arith.constant 0 : index
    %10 = vector.load %arg5[%c0_8, %c0_9] : memref<32x1xf32, #tpu.memory_space<vmem>>, vector<32x1xf32>
    %cst_10 = arith.constant dense<0.000000e+00> : vector<32x128xf32>
    %11 = tpu.matmul %9, %8, %cst_10 {dimension_numbers = #tpu.dot_dimension_numbers<[1], [0], [0], [1], [0, 0, 1, 1], [], []>} : vector<32x32xbf16>, vector<32x128xbf16>, vector<32x128xf32> -> vector<32x128xf32>
    %12 = vector.broadcast %10 : vector<32x1xf32> to vector<32x128xf32>
    %13 = arith.addf %11, %12 : vector<32x128xf32>
    %cst_11 = arith.constant 0.000000e+00 : f32
    %14 = vector.broadcast %cst_11 : f32 to vector<32x128xf32>
    %15 = arith.maximumf %13, %14 : vector<32x128xf32>
    %16 = arith.truncf %15 : vector<32x128xf32> to vector<32x128xbf16>
    %c0_12 = arith.constant 0 : index
    %c0_13 = arith.constant 0 : index
    %17 = vector.load %arg6[%c0_12, %c0_13] : memref<32x32xbf16, #tpu.memory_space<vmem>>, vector<32x32xbf16>
    %c0_14 = arith.constant 0 : index
    %c0_15 = arith.constant 0 : index
    %18 = vector.load %arg7[%c0_14, %c0_15] : memref<32x1xf32, #tpu.memory_space<vmem>>, vector<32x1xf32>
    %cst_16 = arith.constant dense<0.000000e+00> : vector<32x128xf32>
    %19 = tpu.matmul %17, %16, %cst_16 {dimension_numbers = #tpu.dot_dimension_numbers<[1], [0], [0], [1], [0, 0, 1, 1], [], []>} : vector<32x32xbf16>, vector<32x128xbf16>, vector<32x128xf32> -> vector<32x128xf32>
    %20 = vector.broadcast %18 : vector<32x1xf32> to vector<32x128xf32>
    %21 = arith.addf %19, %20 : vector<32x128xf32>
    %cst_17 = arith.constant 0.000000e+00 : f32
    %22 = vector.broadcast %cst_17 : f32 to vector<32x128xf32>
    %23 = arith.maximumf %21, %22 : vector<32x128xf32>
    %24 = arith.truncf %23 : vector<32x128xf32> to vector<32x128xbf16>
    %c0_18 = arith.constant 0 : index
    %c0_19 = arith.constant 0 : index
    %25 = vector.load %arg8[%c0_18, %c0_19] : memref<16x32xbf16, #tpu.memory_space<vmem>>, vector<16x32xbf16>
    %cst_20 = arith.constant dense<0.000000e+00> : vector<16x128xf32>
    %26 = tpu.matmul %25, %24, %cst_20 {dimension_numbers = #tpu.dot_dimension_numbers<[1], [0], [0], [1], [0, 0, 1, 1], [], []>} : vector<16x32xbf16>, vector<32x128xbf16>, vector<16x128xf32> -> vector<16x128xf32>
    %27 = vector.extract_strided_slice %26 {offsets = [0, 0], sizes = [1, 128], strides = [1, 1]} : vector<16x128xf32> to vector<1x128xf32>
    %c0_21 = arith.constant 0 : index
    %c0_22 = arith.constant 0 : index
    %28 = memref.load %arg9[%c0_21, %c0_22] : memref<1x1xf32, #tpu.memory_space<smem>>
    %29 = vector.broadcast %28 : f32 to vector<1x128xf32>
    %30 = arith.addf %27, %29 : vector<1x128xf32>
    %c0_23 = arith.constant 0 : index
    %c0_24 = arith.constant 0 : index
    %31 = vector.load %arg10[%c0_23, %c0_24] : memref<1x128xf32, #tpu.memory_space<vmem>>, vector<1x128xf32>
    tpu.vector_store %arg10[%c0_23, %c0_24], %30 {strides = array<i32>} : memref<1x128xf32, #tpu.memory_space<vmem>>, vector<1x128xf32>,
    return
  }
  func.func @transform_0(%arg0: i32) -> (i32, i32) {
    %c0_i32 = arith.constant 0 : i32
    %c0_i32_0 = arith.constant 0 : i32
    return %c0_i32, %arg0 : i32, i32
  }
  func.func @transform_1(%arg0: i32) -> (i32, i32) {
    %c0_i32 = arith.constant 0 : i32
    %c0_i32_0 = arith.constant 0 : i32
    %c0_i32_1 = arith.constant 0 : i32
    return %c0_i32, %c0_i32_0 : i32, i32
  }
  func.func @transform_2(%arg0: i32) -> (i32, i32) {
    %c0_i32 = arith.constant 0 : i32
    %c0_i32_0 = arith.constant 0 : i32
    %c0_i32_1 = arith.constant 0 : i32
    return %c0_i32, %c0_i32_0 : i32, i32
  }
  func.func @transform_3(%arg0: i32) -> (i32, i32) {
    %c0_i32 = arith.constant 0 : i32
    %c0_i32_0 = arith.constant 0 : i32
    %c0_i32_1 = arith.constant 0 : i32
    return %c0_i32, %c0_i32_0 : i32, i32
  }
  func.func @transform_4(%arg0: i32) -> (i32, i32) {
    %c0_i32 = arith.constant 0 : i32
    %c0_i32_0 = arith.constant 0 : i32
    %c0_i32_1 = arith.constant 0 : i32
    return %c0_i32, %c0_i32_0 : i32, i32
  }
  func.func @transform_5(%arg0: i32) -> (i32, i32) {
    %c0_i32 = arith.constant 0 : i32
    %c0_i32_0 = arith.constant 0 : i32
    %c0_i32_1 = arith.constant 0 : i32
    return %c0_i32, %c0_i32_0 : i32, i32
  }
  func.func @transform_6(%arg0: i32) -> (i32, i32) {
    %c0_i32 = arith.constant 0 : i32
    %c0_i32_0 = arith.constant 0 : i32
    %c0_i32_1 = arith.constant 0 : i32
    return %c0_i32, %c0_i32_0 : i32, i32
  }
  func.func @transform_7(%arg0: i32) -> (i32, i32) {
    %c0_i32 = arith.constant 0 : i32
    %c0_i32_0 = arith.constant 0 : i32
    %c0_i32_1 = arith.constant 0 : i32
    return %c0_i32, %c0_i32_0 : i32, i32
  }
  func.func @transform_8(%arg0: i32) -> (i32, i32) {
    %c0_i32 = arith.constant 0 : i32
    %c0_i32_0 = arith.constant 0 : i32
    %c0_i32_1 = arith.constant 0 : i32
    return %c0_i32, %c0_i32_0 : i32, i32
  }
  func.func @transform_9(%arg0: i32) -> (i32, i32) {
    %c0_i32 = arith.constant 0 : i32
    %c0_i32_0 = arith.constant 0 : i32
    return %c0_i32, %arg0 : i32, i32
  }
}

</mosaic_0001>

<llo_original>
// kernel: tpu_custom_call.1
$region0: #{tpu_custom_call.1}
  #allocation0 [shape = 'u32[]', space=smem, size = 0x4, offset = 0x4, fixed_abs, tag = 'smem constant byte address 0x4 - core index']
  #allocation1 [shape = 'u32[144,128]{1,0:T(1,128)}', space=vmem, size = 0x12000, scoped, tag = 'internal scratch']
  #allocation2 [shape = 'f32[1,1]{1,0:T(1,128)S(6)}', space=smem, size = 0x200, scoped, tag = 'scoped memory for tpu_custom_call.1']
  %s0 = inlined_call_operand.vmem [shape: bf16[16,128], index: 0, kind: input, shape index: {}]
  %s1 = inlined_call_operand.vmem [shape: bf16[32,16], index: 1, kind: input, shape index: {}]
  %s2 = inlined_call_operand.vmem [shape: f32[32,1], index: 2, kind: input, shape index: {}]
  %s3 = inlined_call_operand.vmem [shape: bf16[32,32], index: 3, kind: input, shape index: {}]
  %s4 = inlined_call_operand.vmem [shape: f32[32,1], index: 4, kind: input, shape index: {}]
  %s5 = inlined_call_operand.vmem [shape: bf16[32,32], index: 5, kind: input, shape index: {}]
  %s6 = inlined_call_operand.vmem [shape: f32[32,1], index: 6, kind: input, shape index: {}]
  %s7 = inlined_call_operand.vmem [shape: bf16[16,32], index: 7, kind: input, shape index: {}]
  %s8 = inlined_call_operand.<no memory space> [shape: f32[1,1], index: 8, kind: input, shape index: {}]
  %s9 = inlined_call_operand.hbm [shape: f32[1,128], index: 9, kind: output, shape index: {}]
  %s10 = sld [smem:[#allocation0]]
  $region46: #{tpu_custom_call.1} parent=0
    _
  %s12 = ssub.s32 1, %s10
  %s13 = scalar_select 0, %s12, %s10
  %14 = sst [smem:[#allocation2]] %s8
  $region1: #{tpu_custom_call.1} parent=0
    #allocation3 [shape = 'u8[512]{0}', space=vmem, size = 0x400, scoped, tag = 'output window, operand 0, single buffered']
    #allocation4 [shape = 's32[1]{0}', space=sflag, size = 0x4, scoped, tag = 'scoped memory for tpu_custom_call.1']
    %15 = vsyncpa [#allocation4], 0
    // Predicated region
    $region2: #{tpu_custom_call.1} parent=1 // pred_check
      _
    $region3: #{tpu_custom_call.1} parent=1 // pred_check_branch
      %17 = sbr.rel (0) target = $region5
    $region4: #{tpu_custom_call.1} parent=1 // pred_region
      _
    $region5: #{tpu_custom_call.1} parent=1 // pred_fallthru
      _
    // Predicated region
    $region6: #{tpu_custom_call.1} parent=1 // pred_check
      _
    $region7: #{tpu_custom_call.1} parent=1 // pred_check_branch
      %19 = sbr.rel (0) target = $region9
    $region8: #{tpu_custom_call.1} parent=1 // pred_region
      _
    $region9: #{tpu_custom_call.1} parent=1 // pred_fallthru
      _
    // Predicated region
    $region10: #{tpu_custom_call.1} parent=1 // pred_check
      _
    $region11: #{tpu_custom_call.1} parent=1 // pred_check_branch
      %21 = sbr.rel (0) target = $region13
    $region12: #{tpu_custom_call.1} parent=1 // pred_region
      _
    $region13: #{tpu_custom_call.1} parent=1 // pred_fallthru
      _
    // Predicated region
    $region14: #{tpu_custom_call.1} parent=1 // pred_check
      _
    $region15: #{tpu_custom_call.1} parent=1 // pred_check_branch
      %23 = sbr.rel (0) target = $region17
    $region16: #{tpu_custom_call.1} parent=1 // pred_region
      _
    $region17: #{tpu_custom_call.1} parent=1 // pred_fallthru
      _
    // Predicated region
    $region18: #{tpu_custom_call.1} parent=1 // pred_check
      _
    $region19: #{tpu_custom_call.1} parent=1 // pred_check_branch
      %25 = sbr.rel (0) target = $region21
    $region20: #{tpu_custom_call.1} parent=1 // pred_region
      _
    $region21: #{tpu_custom_call.1} parent=1 // pred_fallthru
      _
    // Predicated region
    $region22: #{tpu_custom_call.1} parent=1 // pred_check
      _
    $region23: #{tpu_custom_call.1} parent=1 // pred_check_branch
      %27 = sbr.rel (0) target = $region25
    $region24: #{tpu_custom_call.1} parent=1 // pred_region
      _
    $region25: #{tpu_custom_call.1} parent=1 // pred_fallthru
      _
    // Predicated region
    $region26: #{tpu_custom_call.1} parent=1 // pred_check
      _
    $region27: #{tpu_custom_call.1} parent=1 // pred_check_branch
      %29 = sbr.rel (0) target = $region29
    $region28: #{tpu_custom_call.1} parent=1 // pred_region
      _
    $region29: #{tpu_custom_call.1} parent=1 // pred_fallthru
      _
    // Predicated region
    $region30: #{tpu_custom_call.1} parent=1 // pred_check
      _
    $region31: #{tpu_custom_call.1} parent=1 // pred_check_branch
      %31 = sbr.rel (0) target = $region33
    $region32: #{tpu_custom_call.1} parent=1 // pred_region
      _
    $region33: #{tpu_custom_call.1} parent=1 // pred_fallthru
      _
    // Predicated region
    $region34: #{tpu_custom_call.1} parent=1 // pred_check
      _
    $region35: #{tpu_custom_call.1} parent=1 // pred_check_branch
      %33 = sbr.rel (0) target = $region37
    $region36: #{tpu_custom_call.1} parent=1 // pred_region
      _
    $region37: #{tpu_custom_call.1} parent=1 // pred_fallthru
      _
    %v35 = vld [vmem:[%s0] sm:$0xf]
    %v36 = vld [vmem:[%s0 + $0x4] sm:$0xf]
    %v37 = vld [vmem:[%s1] sm:$0xf]
    %v38 = vld [vmem:[%s1 + $0x4] sm:$0xf]
    %v39 = vld [vmem:[%s1 + $0x8] sm:$0xf]
    %v40 = vld [vmem:[%s1 + $0xc] sm:$0xf]
    %v41 = vld [vmem:[%s2] sm:$0xff]
    %v42 = vld [vmem:[%s2 + $0x8] sm:$0xff]
    %v43 = vld [vmem:[%s2 + $0x10] sm:$0xff]
    %v44 = vld [vmem:[%s2 + $0x18] sm:$0xff]
    %46 = vset.pattern.permute.xlu0 0
    %47 = vperm.xlu0 %46, %v41
    %v48 = vpop.permute.xlu0 %47
    %51 = vset.pattern.permute.xlu0 0
    %52 = vperm.xlu0 %51, %v42
    %v53 = vpop.permute.xlu0 %52
    %56 = vset.pattern.permute.xlu0 0
    %57 = vperm.xlu0 %56, %v43
    %v58 = vpop.permute.xlu0 %57
    %61 = vset.pattern.permute.xlu0 0
    %62 = vperm.xlu0 %61, %v44
    %v63 = vpop.permute.xlu0 %62
    %v69 = vunpack.c.l.b16 %v37
    %v70 = vunpack.c.l.b16 %v38
    %v71 = vunpack.c.l.b16 %v39
    %v72 = vunpack.c.l.b16 %v40
    %v73 = vpack.c.b16 %v70, %v69
    %v74 = vpack.c.b16 %v72, %v71
    %v77 = vunpack.c.l.b16 %v35
    %v78 = vunpack.c.l.b16 %v36
    %v79 = vpack.c.b16 %v78, %v77
    %vm81 = vcmask 130048
    %v83 = vsel %vm81, %v73, 0
    %v86 = vsel %vm81, %v74, 0
    %88 = vmatprep.subr.bf16.mxu0 0
    %89 = vmatpush1.bf16.msra.mxu0 %v79
    %90 = vmatprep.subr.bf16.mxu0 0
    %91 = vmatpush1.bf16.msra.mxu0 0
    %92 = vmatprep.subr.bf16.mxu0 0
    %93 = vmatpush1.bf16.msra.mxu0 0
    %94 = vmatprep.subr.bf16.mxu0 0
    %95 = vmatpush1.bf16.msra.mxu0 0
    %96 = vmatprep.subr.bf16.mxu0 0
    %97 = vmatpush1.bf16.msra.mxu0 0
    %98 = vmatprep.subr.bf16.mxu0 0
    %99 = vmatpush1.bf16.msra.mxu0 0
    %100 = vmatprep.subr.bf16.mxu0 0
    %101 = vmatpush1.bf16.msra.mxu0 0
    %102 = vmatprep.subr.bf16.mxu0 0
    %103 = vmatpush1.bf16.msra.mxu0 0
    %104 = vmatprep.subr.bf16.mxu0 0
    %105 = vmatpush1.bf16.msra.mxu0 0
    %106 = vmatprep.subr.bf16.mxu0 0
    %107 = vmatpush1.bf16.msra.mxu0 0
    %108 = vmatprep.subr.bf16.mxu0 0
    %109 = vmatpush1.bf16.msra.mxu0 0
    %110 = vmatprep.subr.bf16.mxu0 0
    %111 = vmatpush1.bf16.msra.mxu0 0
    %112 = vmatprep.subr.bf16.mxu0 0
    %113 = vmatpush1.bf16.msra.mxu0 0
    %114 = vmatprep.subr.bf16.mxu0 0
    %115 = vmatpush1.bf16.msra.mxu0 0
    %116 = vmatprep.subr.bf16.mxu0 0
    %117 = vmatpush1.bf16.msra.mxu0 0
    %118 = vmatprep.subr.bf16.mxu0 0
    %119 = vmatpush1.bf16.msra.mxu0 0
    %120 = vmatprep.mubr.bf16.mxu0 0
    %121 = vmatmul.mubr.bf16.gmra.mrb[0].mxu0 %v83
    %v122 = vpop.f32.mrb[0].mxu0
    %v123 = vadd.f32 %v48, %v122
    %v124 = vpop.f32.mrb[0].mxu0
    %v125 = vpop.f32.mrb[0].mxu0
    %v126 = vadd.f32 %v53, %v125
    %v127 = vpop.f32.mrb[0].mxu0
    %128 = vmatprep.mubr.bf16.mxu0 0
    %129 = vmatmul.mubr.bf16.gmra.mrb[0].mxu0 %v86
    %v130 = vpop.f32.mrb[0].mxu0
    %v131 = vadd.f32 %v58, %v130
    %v132 = vpop.f32.mrb[0].mxu0
    %v133 = vpop.f32.mrb[0].mxu0
    %v134 = vadd.f32 %v63, %v133
    %v135 = vpop.f32.mrb[0].mxu0
    %136 = vdwg.mxu0
    %v137 = vmax.f32 %v123, 0.0
    %v138 = vmax.f32 %v126, 0.0
    %v139 = vmax.f32 %v131, 0.0
    %v140 = vmax.f32 %v134, 0.0
    %v141 = vpack.c.bf16 %v138, %v137
    %v142 = vpack.c.bf16 %v140, %v139
    %v143 = vld [vmem:[%s3] sm:$0xf]
    %v144 = vld [vmem:[%s3 + $0x4] sm:$0xf]
    %v145 = vld [vmem:[%s3 + $0x8] sm:$0xf]
    %v146 = vld [vmem:[%s3 + $0xc] sm:$0xf]
    %v147 = vld [vmem:[%s4] sm:$0xff]
    %v148 = vld [vmem:[%s4 + $0x8] sm:$0xff]
    %v149 = vld [vmem:[%s4 + $0x10] sm:$0xff]
    %v150 = vld [vmem:[%s4 + $0x18] sm:$0xff]
    %152 = vset.pattern.permute.xlu0 0
    %153 = vperm.xlu0 %152, %v147
    %v154 = vpop.permute.xlu0 %153
    %157 = vset.pattern.permute.xlu0 0
    %158 = vperm.xlu0 %157, %v148
    %v159 = vpop.permute.xlu0 %158
    %162 = vset.pattern.permute.xlu0 0
    %163 = vperm.xlu0 %162, %v149
    %v164 = vpop.permute.xlu0 %163
    %167 = vset.pattern.permute.xlu0 0
    %168 = vperm.xlu0 %167, %v150
    %v169 = vpop.permute.xlu0 %168
    %v175 = vunpack.c.l.b16 %v143
    %v176 = vunpack.c.l.b16 %v144
    %v177 = vunpack.c.l.b16 %v145
    %v178 = vunpack.c.l.b16 %v146
    %v179 = vpack.c.b16 %v176, %v175
    %v180 = vpack.c.b16 %v178, %v177
    %vm181 = vcmask 261120
    %v183 = vsel %vm181, %v179, 0
    %v186 = vsel %vm181, %v180, 0
    %188 = vmatprep.subr.bf16.mxu0 0
    %189 = vmatpush1.bf16.msra.mxu0 %v141
    %190 = vmatprep.subr.bf16.mxu0 0
    %191 = vmatpush1.bf16.msra.mxu0 %v142
    %192 = vmatprep.subr.bf16.mxu0 0
    %193 = vmatpush1.bf16.msra.mxu0 0
    %194 = vmatprep.subr.bf16.mxu0 0
    %195 = vmatpush1.bf16.msra.mxu0 0
    %196 = vmatprep.subr.bf16.mxu0 0
    %197 = vmatpush1.bf16.msra.mxu0 0
    %198 = vmatprep.subr.bf16.mxu0 0
    %199 = vmatpush1.bf16.msra.mxu0 0
    %200 = vmatprep.subr.bf16.mxu0 0
    %201 = vmatpush1.bf16.msra.mxu0 0
    %202 = vmatprep.subr.bf16.mxu0 0
    %203 = vmatpush1.bf16.msra.mxu0 0
    %204 = vmatprep.subr.bf16.mxu0 0
    %205 = vmatpush1.bf16.msra.mxu0 0
    %206 = vmatprep.subr.bf16.mxu0 0
    %207 = vmatpush1.bf16.msra.mxu0 0
    %208 = vmatprep.subr.bf16.mxu0 0
    %209 = vmatpush1.bf16.msra.mxu0 0
    %210 = vmatprep.subr.bf16.mxu0 0
    %211 = vmatpush1.bf16.msra.mxu0 0
    %212 = vmatprep.subr.bf16.mxu0 0
    %213 = vmatpush1.bf16.msra.mxu0 0
    %214 = vmatprep.subr.bf16.mxu0 0
    %215 = vmatpush1.bf16.msra.mxu0 0
    %216 = vmatprep.subr.bf16.mxu0 0
    %217 = vmatpush1.bf16.msra.mxu0 0
    %218 = vmatprep.subr.bf16.mxu0 0
    %219 = vmatpush1.bf16.msra.mxu0 0
    %220 = vmatprep.mubr.bf16.mxu0 0
    %221 = vmatmul.mubr.bf16.gmra.mrb[0].mxu0 %v183
    %v222 = vpop.f32.mrb[0].mxu0
    %v223 = vadd.f32 %v154, %v222
    %v224 = vpop.f32.mrb[0].mxu0
    %v225 = vpop.f32.mrb[0].mxu0
    %v226 = vadd.f32 %v159, %v225
    %v227 = vpop.f32.mrb[0].mxu0
    %228 = vmatprep.mubr.bf16.mxu0 0
    %229 = vmatmul.mubr.bf16.gmra.mrb[0].mxu0 %v186
    %v230 = vpop.f32.mrb[0].mxu0
    %v231 = vadd.f32 %v164, %v230
    %v232 = vpop.f32.mrb[0].mxu0
    %v233 = vpop.f32.mrb[0].mxu0
    %v234 = vadd.f32 %v169, %v233
    %v235 = vpop.f32.mrb[0].mxu0
    %236 = vdwg.mxu0
    %v237 = vmax.f32 %v223, 0.0
    %v238 = vmax.f32 %v226, 0.0
    %v239 = vmax.f32 %v231, 0.0
    %v240 = vmax.f32 %v234, 0.0
    %v241 = vpack.c.bf16 %v238, %v237
    %v242 = vpack.c.bf16 %v240, %v239
    %v243 = vld [vmem:[%s5] sm:$0xf]
    %v244 = vld [vmem:[%s5 + $0x4] sm:$0xf]
    %v245 = vld [vmem:[%s5 + $0x8] sm:$0xf]
    %v246 = vld [vmem:[%s5 + $0xc] sm:$0xf]
    %v247 = vld [vmem:[%s6] sm:$0xff]
    %v248 = vld [vmem:[%s6 + $0x8] sm:$0xff]
    %v249 = vld [vmem:[%s6 + $0x10] sm:$0xff]
    %v250 = vld [vmem:[%s6 + $0x18] sm:$0xff]
    %252 = vset.pattern.permute.xlu0 0
    %253 = vperm.xlu0 %252, %v247
    %v254 = vpop.permute.xlu0 %253
    %257 = vset.pattern.permute.xlu0 0
    %258 = vperm.xlu0 %257, %v248
    %v259 = vpop.permute.xlu0 %258
    %262 = vset.pattern.permute.xlu0 0
    %263 = vperm.xlu0 %262, %v249
    %v264 = vpop.permute.xlu0 %263
    %267 = vset.pattern.permute.xlu0 0
    %268 = vperm.xlu0 %267, %v250
    %v269 = vpop.permute.xlu0 %268
    %v275 = vunpack.c.l.b16 %v243
    %v276 = vunpack.c.l.b16 %v244
    %v277 = vunpack.c.l.b16 %v245
    %v278 = vunpack.c.l.b16 %v246
    %v279 = vpack.c.b16 %v276, %v275
    %v280 = vpack.c.b16 %v278, %v277
    %v282 = vsel %vm181, %v279, 0
    %v285 = vsel %vm181, %v280, 0
    %287 = vmatprep.subr.bf16.mxu0 0
    %288 = vmatpush1.bf16.msra.mxu0 %v241
    %289 = vmatprep.subr.bf16.mxu0 0
    %290 = vmatpush1.bf16.msra.mxu0 %v242
    %291 = vmatprep.subr.bf16.mxu0 0
    %292 = vmatpush1.bf16.msra.mxu0 0
    %293 = vmatprep.subr.bf16.mxu0 0
    %294 = vmatpush1.bf16.msra.mxu0 0
    %295 = vmatprep.subr.bf16.mxu0 0
    %296 = vmatpush1.bf16.msra.mxu0 0
    %297 = vmatprep.subr.bf16.mxu0 0
    %298 = vmatpush1.bf16.msra.mxu0 0
    %299 = vmatprep.subr.bf16.mxu0 0
    %300 = vmatpush1.bf16.msra.mxu0 0
    %301 = vmatprep.subr.bf16.mxu0 0
    %302 = vmatpush1.bf16.msra.mxu0 0
    %303 = vmatprep.subr.bf16.mxu0 0
    %304 = vmatpush1.bf16.msra.mxu0 0
    %305 = vmatprep.subr.bf16.mxu0 0
    %306 = vmatpush1.bf16.msra.mxu0 0
    %307 = vmatprep.subr.bf16.mxu0 0
    %308 = vmatpush1.bf16.msra.mxu0 0
    %309 = vmatprep.subr.bf16.mxu0 0
    %310 = vmatpush1.bf16.msra.mxu0 0
    %311 = vmatprep.subr.bf16.mxu0 0
    %312 = vmatpush1.bf16.msra.mxu0 0
    %313 = vmatprep.subr.bf16.mxu0 0
    %314 = vmatpush1.bf16.msra.mxu0 0
    %315 = vmatprep.subr.bf16.mxu0 0
    %316 = vmatpush1.bf16.msra.mxu0 0
    %317 = vmatprep.subr.bf16.mxu0 0
    %318 = vmatpush1.bf16.msra.mxu0 0
    %319 = vmatprep.mubr.bf16.mxu0 0
    %320 = vmatmul.mubr.bf16.gmra.mrb[0].mxu0 %v282
    %v321 = vpop.f32.mrb[0].mxu0
    %v322 = vadd.f32 %v254, %v321
    %v323 = vpop.f32.mrb[0].mxu0
    %v324 = vpop.f32.mrb[0].mxu0
    %v325 = vadd.f32 %v259, %v324
    %v326 = vpop.f32.mrb[0].mxu0
    %327 = vmatprep.mubr.bf16.mxu0 0
    %328 = vmatmul.mubr.bf16.gmra.mrb[0].mxu0 %v285
    %v329 = vpop.f32.mrb[0].mxu0
    %v330 = vadd.f32 %v264, %v329
    %v331 = vpop.f32.mrb[0].mxu0
    %v332 = vpop.f32.mrb[0].mxu0
    %v333 = vadd.f32 %v269, %v332
    %v334 = vpop.f32.mrb[0].mxu0
    %335 = vdwg.mxu0
    %v336 = vmax.f32 %v322, 0.0
    %v337 = vmax.f32 %v325, 0.0
    %v338 = vmax.f32 %v330, 0.0
    %v339 = vmax.f32 %v333, 0.0
    %v340 = vpack.c.bf16 %v337, %v336
    %v341 = vpack.c.bf16 %v339, %v338
    %v342 = vld [vmem:[%s7] sm:$0xf]
    %v343 = vld [vmem:[%s7 + $0x4] sm:$0xf]
    %v346 = vunpack.c.l.b16 %v342
    %v347 = vunpack.c.l.b16 %v343
    %v348 = vpack.c.b16 %v347, %v346
    %v350 = vsel %vm181, %v348, 0
    %352 = vmatprep.subr.bf16.mxu0 0
    %353 = vmatpush1.bf16.msra.mxu0 %v340
    %354 = vmatprep.subr.bf16.mxu0 0
    %355 = vmatpush1.bf16.msra.mxu0 %v341
    %356 = vmatprep.subr.bf16.mxu0 0
    %357 = vmatpush1.bf16.msra.mxu0 0
    %358 = vmatprep.subr.bf16.mxu0 0
    %359 = vmatpush1.bf16.msra.mxu0 0
    %360 = vmatprep.subr.bf16.mxu0 0
    %361 = vmatpush1.bf16.msra.mxu0 0
    %362 = vmatprep.subr.bf16.mxu0 0
    %363 = vmatpush1.bf16.msra.mxu0 0
    %364 = vmatprep.subr.bf16.mxu0 0
    %365 = vmatpush1.bf16.msra.mxu0 0
    %366 = vmatprep.subr.bf16.mxu0 0
    %367 = vmatpush1.bf16.msra.mxu0 0
    %368 = vmatprep.subr.bf16.mxu0 0
    %369 = vmatpush1.bf16.msra.mxu0 0
    %370 = vmatprep.subr.bf16.mxu0 0
    %371 = vmatpush1.bf16.msra.mxu0 0
    %372 = vmatprep.subr.bf16.mxu0 0
    %373 = vmatpush1.bf16.msra.mxu0 0
    %374 = vmatprep.subr.bf16.mxu0 0
    %375 = vmatpush1.bf16.msra.mxu0 0
    %376 = vmatprep.subr.bf16.mxu0 0
    %377 = vmatpush1.bf16.msra.mxu0 0
    %378 = vmatprep.subr.bf16.mxu0 0
    %379 = vmatpush1.bf16.msra.mxu0 0
    %380 = vmatprep.subr.bf16.mxu0 0
    %381 = vmatpush1.bf16.msra.mxu0 0
    %382 = vmatprep.subr.bf16.mxu0 0
    %383 = vmatpush1.bf16.msra.mxu0 0
    %384 = vmatprep.mubr.bf16.mxu0 0
    %385 = vmatmul.mubr.bf16.gmra.mrb[0].mxu0 %v350
    %v386 = vpop.f32.mrb[0].mxu0
    %v387 = vadd.f32 0.0, %v386
    %v388 = vpop.f32.mrb[0].mxu0
    %v389 = vpop.f32.mrb[0].mxu0
    %v390 = vpop.f32.mrb[0].mxu0
    %391 = vdwg.mxu0
    %s392 = sld [smem:[#allocation2]]
    %v393 = vstv %s392
    %v394 = vadd.f32 %v387, %v393
    %395 = vst [vmem:[#allocation3] sm:$0x1] %v394
    // Predicated region
    $region38: #{tpu_custom_call.1} parent=1 // pred_check
      _
    $region39: #{tpu_custom_call.1} parent=1 // pred_check_branch
      %397 = sbr.rel (0) target = $region41
    $region40: #{tpu_custom_call.1} parent=1 // pred_region
      %s399 = ssub.s32 16, 16
      %400 = vsyncadd [#allocation4], %s399
      %s402 = sshll.u32 [#allocation3], 4
      %s403 = int_to_ptr.vmem [resolvable:$true] %s402
      %405 = dma.vmem_to_hbm [thread:$0]  %s403, 16, %s9, [#allocation4]
    $region41: #{tpu_custom_call.1} parent=1 // pred_fallthru
      _
    // Predicated region
    $region42: #{tpu_custom_call.1} parent=1 // pred_check
      _
    $region43: #{tpu_custom_call.1} parent=1 // pred_check_branch
      %407 = sbr.rel (0) target = $region45
    $region44: #{tpu_custom_call.1} parent=1 // pred_region
      %408 = dma.done [#allocation4], 16
    $region45: #{tpu_custom_call.1} parent=1 // pred_fallthru
      _
    %409 = vsyncpa [#allocation4], 1

// kernel: tpu_custom_call.1
$region0: #{tpu_custom_call.1}
  #allocation0 [shape = 'u32[]', space=smem, size = 0x4, offset = 0x4, fixed_abs, tag = 'smem constant byte address 0x4 - core index']
  #allocation1 [shape = 'u32[144,128]{1,0:T(1,128)}', space=vmem, size = 0x12000, scoped, tag = 'internal scratch']
  #allocation2 [shape = 'f32[1,1]{1,0:T(1,128)S(6)}', space=smem, size = 0x200, scoped, tag = 'scoped memory for tpu_custom_call.1']
  %s0 = inlined_call_operand.vmem [shape: bf16[16,128], index: 0, kind: input, shape index: {}]
  %s1 = inlined_call_operand.vmem [shape: bf16[32,16], index: 1, kind: input, shape index: {}]
  %s2 = inlined_call_operand.vmem [shape: f32[32,1], index: 2, kind: input, shape index: {}]
  %s3 = inlined_call_operand.vmem [shape: bf16[32,32], index: 3, kind: input, shape index: {}]
  %s4 = inlined_call_operand.vmem [shape: f32[32,1], index: 4, kind: input, shape index: {}]
  %s5 = inlined_call_operand.vmem [shape: bf16[32,32], index: 5, kind: input, shape index: {}]
  %s6 = inlined_call_operand.vmem [shape: f32[32,1], index: 6, kind: input, shape index: {}]
  %s7 = inlined_call_operand.vmem [shape: bf16[16,32], index: 7, kind: input, shape index: {}]
  %s8 = inlined_call_operand.<no memory space> [shape: f32[1,1], index: 8, kind: input, shape index: {}]
  %s9 = inlined_call_operand.hbm [shape: f32[1,128], index: 9, kind: output, shape index: {}]
  %s10 = sld [smem:[#allocation0]]
  $region46: #{tpu_custom_call.1} parent=0
    _
  %s12 = ssub.s32 1, %s10
  %s13 = scalar_select 0, %s12, %s10
  %14 = sst [smem:[#allocation2]] %s8
  $region1: #{tpu_custom_call.1} parent=0
    #allocation3 [shape = 'u8[512]{0}', space=vmem, size = 0x400, scoped, tag = 'output window, operand 0, single buffered']
    #allocation4 [shape = 's32[1]{0}', space=sflag, size = 0x4, scoped, tag = 'scoped memory for tpu_custom_call.1']
    %15 = vsyncpa [#allocation4], 0
    // Predicated region
    $region2: #{tpu_custom_call.1} parent=1 // pred_check
      _
    $region3: #{tpu_custom_call.1} parent=1 // pred_check_branch
      %17 = sbr.rel (0) target = $region5
    $region4: #{tpu_custom_call.1} parent=1 // pred_region
      _
    $region5: #{tpu_custom_call.1} parent=1 // pred_fallthru
      _
    // Predicated region
    $region6: #{tpu_custom_call.1} parent=1 // pred_check
      _
    $region7: #{tpu_custom_call.1} parent=1 // pred_check_branch
      %19 = sbr.rel (0) target = $region9
    $region8: #{tpu_custom_call.1} parent=1 // pred_region
      _
    $region9: #{tpu_custom_call.1} parent=1 // pred_fallthru
      _
    // Predicated region
    $region10: #{tpu_custom_call.1} parent=1 // pred_check
      _
    $region11: #{tpu_custom_call.1} parent=1 // pred_check_branch
      %21 = sbr.rel (0) target = $region13
    $region12: #{tpu_custom_call.1} parent=1 // pred_region
      _
    $region13: #{tpu_custom_call.1} parent=1 // pred_fallthru
      _
    // Predicated region
    $region14: #{tpu_custom_call.1} parent=1 // pred_check
      _
    $region15: #{tpu_custom_call.1} parent=1 // pred_check_branch
      %23 = sbr.rel (0) target = $region17
    $region16: #{tpu_custom_call.1} parent=1 // pred_region
      _
    $region17: #{tpu_custom_call.1} parent=1 // pred_fallthru
      _
    // Predicated region
    $region18: #{tpu_custom_call.1} parent=1 // pred_check
      _
    $region19: #{tpu_custom_call.1} parent=1 // pred_check_branch
      %25 = sbr.rel (0) target = $region21
    $region20: #{tpu_custom_call.1} parent=1 // pred_region
      _
    $region21: #{tpu_custom_call.1} parent=1 // pred_fallthru
      _
    // Predicated region
    $region22: #{tpu_custom_call.1} parent=1 // pred_check
      _
    $region23: #{tpu_custom_call.1} parent=1 // pred_check_branch
      %27 = sbr.rel (0) target = $region25
    $region24: #{tpu_custom_call.1} parent=1 // pred_region
      _
    $region25: #{tpu_custom_call.1} parent=1 // pred_fallthru
      _
    // Predicated region
    $region26: #{tpu_custom_call.1} parent=1 // pred_check
      _
    $region27: #{tpu_custom_call.1} parent=1 // pred_check_branch
      %29 = sbr.rel (0) target = $region29
    $region28: #{tpu_custom_call.1} parent=1 // pred_region
      _
    $region29: #{tpu_custom_call.1} parent=1 // pred_fallthru
      _
    // Predicated region
    $region30: #{tpu_custom_call.1} parent=1 // pred_check
      _
    $region31: #{tpu_custom_call.1} parent=1 // pred_check_branch
      %31 = sbr.rel (0) target = $region33
    $region32: #{tpu_custom_call.1} parent=1 // pred_region
      _
    $region33: #{tpu_custom_call.1} parent=1 // pred_fallthru
      _
    // Predicated region
    $region34: #{tpu_custom_call.1} parent=1 // pred_check
      _
    $region35: #{tpu_custom_call.1} parent=1 // pred_check_branch
      %33 = sbr.rel (0) target = $region37
    $region36: #{tpu_custom_call.1} parent=1 // pred_region
      _
    $region37: #{tpu_custom_call.1} parent=1 // pred_fallthru
      _
    %v35 = vld [vmem:[%s0] sm:$0xf]
    %v36 = vld [vmem:[%s0 + $0x4] sm:$0xf]
    %v37 = vld [vmem:[%s1] sm:$0xf]
    %v38 = vld [vmem:[%s1 + $0x4] sm:$0xf]
    %v39 = vld [vmem:[%s1 + $0x8] sm:$0xf]
    %v40 = vld [vmem:[%s1 + $0xc] sm:$0xf]
    %v41 = vld [vmem:[%s2] sm:$0xff]
    %v42 = vld [vmem:[%s2 + $0x8] sm:$0xff]
    %v43 = vld [vmem:[%s2 + $0x10] sm:$0xff]
    %v44 = vld [vmem:[%s2 + $0x18] sm:$0xff]
    %46 = vset.pattern.permute.xlu0 0
    %47 = vperm.xlu0 %46, %v41
    %v48 = vpop.permute.xlu0 %47
    %51 = vset.pattern.permute.xlu0 0
    %52 = vperm.xlu0 %51, %v42
    %v53 = vpop.permute.xlu0 %52
    %56 = vset.pattern.permute.xlu0 0
    %57 = vperm.xlu0 %56, %v43
    %v58 = vpop.permute.xlu0 %57
    %61 = vset.pattern.permute.xlu0 0
    %62 = vperm.xlu0 %61, %v44
    %v63 = vpop.permute.xlu0 %62
    %v69 = vunpack.c.l.b16 %v37
    %v70 = vunpack.c.l.b16 %v38
    %v71 = vunpack.c.l.b16 %v39
    %v72 = vunpack.c.l.b16 %v40
    %v73 = vpack.c.b16 %v70, %v69
    %v74 = vpack.c.b16 %v72, %v71
    %v77 = vunpack.c.l.b16 %v35
    %v78 = vunpack.c.l.b16 %v36
    %v79 = vpack.c.b16 %v78, %v77
    %vm81 = vcmask 130048
    %v83 = vsel %vm81, %v73, 0
    %v86 = vsel %vm81, %v74, 0
    %88 = vmatprep.subr.bf16.mxu0 0
    %89 = vmatpush1.bf16.msra.mxu0 %v79
    %90 = vmatprep.subr.bf16.mxu0 0
    %91 = vmatpush1.bf16.msra.mxu0 0
    %92 = vmatprep.subr.bf16.mxu0 0
    %93 = vmatpush1.bf16.msra.mxu0 0
    %94 = vmatprep.subr.bf16.mxu0 0
    %95 = vmatpush1.bf16.msra.mxu0 0
    %96 = vmatprep.subr.bf16.mxu0 0
    %97 = vmatpush1.bf16.msra.mxu0 0
    %98 = vmatprep.subr.bf16.mxu0 0
    %99 = vmatpush1.bf16.msra.mxu0 0
    %100 = vmatprep.subr.bf16.mxu0 0
    %101 = vmatpush1.bf16.msra.mxu0 0
    %102 = vmatprep.subr.bf16.mxu0 0
    %103 = vmatpush1.bf16.msra.mxu0 0
    %104 = vmatprep.subr.bf16.mxu0 0
    %105 = vmatpush1.bf16.msra.mxu0 0
    %106 = vmatprep.subr.bf16.mxu0 0
    %107 = vmatpush1.bf16.msra.mxu0 0
    %108 = vmatprep.subr.bf16.mxu0 0
    %109 = vmatpush1.bf16.msra.mxu0 0
    %110 = vmatprep.subr.bf16.mxu0 0
    %111 = vmatpush1.bf16.msra.mxu0 0
    %112 = vmatprep.subr.bf16.mxu0 0
    %113 = vmatpush1.bf16.msra.mxu0 0
    %114 = vmatprep.subr.bf16.mxu0 0
    %115 = vmatpush1.bf16.msra.mxu0 0
    %116 = vmatprep.subr.bf16.mxu0 0
    %117 = vmatpush1.bf16.msra.mxu0 0
    %118 = vmatprep.subr.bf16.mxu0 0
    %119 = vmatpush1.bf16.msra.mxu0 0
    %120 = vmatprep.mubr.bf16.mxu0 0
    %121 = vmatmul.mubr.bf16.gmra.mrb[0].mxu0 %v83
    %v122 = vpop.f32.mrb[0].mxu0
    %v123 = vadd.f32 %v48, %v122
    %v124 = vpop.f32.mrb[0].mxu0
    %v125 = vpop.f32.mrb[0].mxu0
    %v126 = vadd.f32 %v53, %v125
    %v127 = vpop.f32.mrb[0].mxu0
    %128 = vmatprep.mubr.bf16.mxu0 0
    %129 = vmatmul.mubr.bf16.gmra.mrb[0].mxu0 %v86
    %v130 = vpop.f32.mrb[0].mxu0
    %v131 = vadd.f32 %v58, %v130
    %v132 = vpop.f32.mrb[0].mxu0
    %v133 = vpop.f32.mrb[0].mxu0
    %v134 = vadd.f32 %v63, %v133
    %v135 = vpop.f32.mrb[0].mxu0
    %136 = vdwg.mxu0
    %v137 = vmax.f32 %v123, 0.0
    %v138 = vmax.f32 %v126, 0.0
    %v139 = vmax.f32 %v131, 0.0
    %v140 = vmax.f32 %v134, 0.0
    %v141 = vpack.c.bf16 %v138, %v137
    %v142 = vpack.c.bf16 %v140, %v139
    %v143 = vld [vmem:[%s3] sm:$0xf]
    %v144 = vld [vmem:[%s3 + $0x4] sm:$0xf]
    %v145 = vld [vmem:[%s3 + $0x8] sm:$0xf]
    %v146 = vld [vmem:[%s3 + $0xc] sm:$0xf]
    %v147 = vld [vmem:[%s4] sm:$0xff]
    %v148 = vld [vmem:[%s4 + $0x8] sm:$0xff]
    %v149 = vld [vmem:[%s4 + $0x10] sm:$0xff]
    %v150 = vld [vmem:[%s4 + $0x18] sm:$0xff]
    %152 = vset.pattern.permute.xlu0 0
    %153 = vperm.xlu0 %152, %v147
    %v154 = vpop.permute.xlu0 %153
    %157 = vset.pattern.permute.xlu0 0
    %158 = vperm.xlu0 %157, %v148
    %v159 = vpop.permute.xlu0 %158
    %162 = vset.pattern.permute.xlu0 0
    %163 = vperm.xlu0 %162, %v149
    %v164 = vpop.permute.xlu0 %163
    %167 = vset.pattern.permute.xlu0 0
    %168 = vperm.xlu0 %167, %v150
    %v169 = vpop.permute.xlu0 %168
    %v175 = vunpack.c.l.b16 %v143
    %v176 = vunpack.c.l.b16 %v144
    %v177 = vunpack.c.l.b16 %v145
    %v178 = vunpack.c.l.b16 %v146
    %v179 = vpack.c.b16 %v176, %v175
    %v180 = vpack.c.b16 %v178, %v177
    %vm181 = vcmask 261120
    %v183 = vsel %vm181, %v179, 0
    %v186 = vsel %vm181, %v180, 0
    %188 = vmatprep.subr.bf16.mxu0 0
    %189 = vmatpush1.bf16.msra.mxu0 %v141
    %190 = vmatprep.subr.bf16.mxu0 0
    %191 = vmatpush1.bf16.msra.mxu0 %v142
    %192 = vmatprep.subr.bf16.mxu0 0
    %193 = vmatpush1.bf16.msra.mxu0 0
    %194 = vmatprep.subr.bf16.mxu0 0
    %195 = vmatpush1.bf16.msra.mxu0 0
    %196 = vmatprep.subr.bf16.mxu0 0
    %197 = vmatpush1.bf16.msra.mxu0 0
    %198 = vmatprep.subr.bf16.mxu0 0
    %199 = vmatpush1.bf16.msra.mxu0 0
    %200 = vmatprep.subr.bf16.mxu0 0
    %201 = vmatpush1.bf16.msra.mxu0 0
    %202 = vmatprep.subr.bf16.mxu0 0
    %203 = vmatpush1.bf16.msra.mxu0 0
    %204 = vmatprep.subr.bf16.mxu0 0
    %205 = vmatpush1.bf16.msra.mxu0 0
    %206 = vmatprep.subr.bf16.mxu0 0
    %207 = vmatpush1.bf16.msra.mxu0 0
    %208 = vmatprep.subr.bf16.mxu0 0
    %209 = vmatpush1.bf16.msra.mxu0 0
    %210 = vmatprep.subr.bf16.mxu0 0
    %211 = vmatpush1.bf16.msra.mxu0 0
    %212 = vmatprep.subr.bf16.mxu0 0
    %213 = vmatpush1.bf16.msra.mxu0 0
    %214 = vmatprep.subr.bf16.mxu0 0
    %215 = vmatpush1.bf16.msra.mxu0 0
    %216 = vmatprep.subr.bf16.mxu0 0
    %217 = vmatpush1.bf16.msra.mxu0 0
    %218 = vmatprep.subr.bf16.mxu0 0
    %219 = vmatpush1.bf16.msra.mxu0 0
    %220 = vmatprep.mubr.bf16.mxu0 0
    %221 = vmatmul.mubr.bf16.gmra.mrb[0].mxu0 %v183
    %v222 = vpop.f32.mrb[0].mxu0
    %v223 = vadd.f32 %v154, %v222
    %v224 = vpop.f32.mrb[0].mxu0
    %v225 = vpop.f32.mrb[0].mxu0
    %v226 = vadd.f32 %v159, %v225
    %v227 = vpop.f32.mrb[0].mxu0
    %228 = vmatprep.mubr.bf16.mxu0 0
    %229 = vmatmul.mubr.bf16.gmra.mrb[0].mxu0 %v186
    %v230 = vpop.f32.mrb[0].mxu0
    %v231 = vadd.f32 %v164, %v230
    %v232 = vpop.f32.mrb[0].mxu0
    %v233 = vpop.f32.mrb[0].mxu0
    %v234 = vadd.f32 %v169, %v233
    %v235 = vpop.f32.mrb[0].mxu0
    %236 = vdwg.mxu0
    %v237 = vmax.f32 %v223, 0.0
    %v238 = vmax.f32 %v226, 0.0
    %v239 = vmax.f32 %v231, 0.0
    %v240 = vmax.f32 %v234, 0.0
    %v241 = vpack.c.bf16 %v238, %v237
    %v242 = vpack.c.bf16 %v240, %v239
    %v243 = vld [vmem:[%s5] sm:$0xf]
    %v244 = vld [vmem:[%s5 + $0x4] sm:$0xf]
    %v245 = vld [vmem:[%s5 + $0x8] sm:$0xf]
    %v246 = vld [vmem:[%s5 + $0xc] sm:$0xf]
    %v247 = vld [vmem:[%s6] sm:$0xff]
    %v248 = vld [vmem:[%s6 + $0x8] sm:$0xff]
    %v249 = vld [vmem:[%s6 + $0x10] sm:$0xff]
    %v250 = vld [vmem:[%s6 + $0x18] sm:$0xff]
    %252 = vset.pattern.permute.xlu0 0
    %253 = vperm.xlu0 %252, %v247
    %v254 = vpop.permute.xlu0 %253
    %257 = vset.pattern.permute.xlu0 0
    %258 = vperm.xlu0 %257, %v248
    %v259 = vpop.permute.xlu0 %258
    %262 = vset.pattern.permute.xlu0 0
    %263 = vperm.xlu0 %262, %v249
    %v264 = vpop.permute.xlu0 %263
    %267 = vset.pattern.permute.xlu0 0
    %268 = vperm.xlu0 %267, %v250
    %v269 = vpop.permute.xlu0 %268
    %v275 = vunpack.c.l.b16 %v243
    %v276 = vunpack.c.l.b16 %v244
    %v277 = vunpack.c.l.b16 %v245
    %v278 = vunpack.c.l.b16 %v246
    %v279 = vpack.c.b16 %v276, %v275
    %v280 = vpack.c.b16 %v278, %v277
    %v282 = vsel %vm181, %v279, 0
    %v285 = vsel %vm181, %v280, 0
    %287 = vmatprep.subr.bf16.mxu0 0
    %288 = vmatpush1.bf16.msra.mxu0 %v241
    %289 = vmatprep.subr.bf16.mxu0 0
    %290 = vmatpush1.bf16.msra.mxu0 %v242
    %291 = vmatprep.subr.bf16.mxu0 0
    %292 = vmatpush1.bf16.msra.mxu0 0
    %293 = vmatprep.subr.bf16.mxu0 0
    %294 = vmatpush1.bf16.msra.mxu0 0
    %295 = vmatprep.subr.bf16.mxu0 0
    %296 = vmatpush1.bf16.msra.mxu0 0
    %297 = vmatprep.subr.bf16.mxu0 0
    %298 = vmatpush1.bf16.msra.mxu0 0
    %299 = vmatprep.subr.bf16.mxu0 0
    %300 = vmatpush1.bf16.msra.mxu0 0
    %301 = vmatprep.subr.bf16.mxu0 0
    %302 = vmatpush1.bf16.msra.mxu0 0
    %303 = vmatprep.subr.bf16.mxu0 0
    %304 = vmatpush1.bf16.msra.mxu0 0
    %305 = vmatprep.subr.bf16.mxu0 0
    %306 = vmatpush1.bf16.msra.mxu0 0
    %307 = vmatprep.subr.bf16.mxu0 0
    %308 = vmatpush1.bf16.msra.mxu0 0
    %309 = vmatprep.subr.bf16.mxu0 0
    %310 = vmatpush1.bf16.msra.mxu0 0
    %311 = vmatprep.subr.bf16.mxu0 0
    %312 = vmatpush1.bf16.msra.mxu0 0
    %313 = vmatprep.subr.bf16.mxu0 0
    %314 = vmatpush1.bf16.msra.mxu0 0
    %315 = vmatprep.subr.bf16.mxu0 0
    %316 = vmatpush1.bf16.msra.mxu0 0
    %317 = vmatprep.subr.bf16.mxu0 0
    %318 = vmatpush1.bf16.msra.mxu0 0
    %319 = vmatprep.mubr.bf16.mxu0 0
    %320 = vmatmul.mubr.bf16.gmra.mrb[0].mxu0 %v282
    %v321 = vpop.f32.mrb[0].mxu0
    %v322 = vadd.f32 %v254, %v321
    %v323 = vpop.f32.mrb[0].mxu0
    %v324 = vpop.f32.mrb[0].mxu0
    %v325 = vadd.f32 %v259, %v324
    %v326 = vpop.f32.mrb[0].mxu0
    %327 = vmatprep.mubr.bf16.mxu0 0
    %328 = vmatmul.mubr.bf16.gmra.mrb[0].mxu0 %v285
    %v329 = vpop.f32.mrb[0].mxu0
    %v330 = vadd.f32 %v264, %v329
    %v331 = vpop.f32.mrb[0].mxu0
    %v332 = vpop.f32.mrb[0].mxu0
    %v333 = vadd.f32 %v269, %v332
    %v334 = vpop.f32.mrb[0].mxu0
    %335 = vdwg.mxu0
    %v336 = vmax.f32 %v322, 0.0
    %v337 = vmax.f32 %v325, 0.0
    %v338 = vmax.f32 %v330, 0.0
    %v339 = vmax.f32 %v333, 0.0
    %v340 = vpack.c.bf16 %v337, %v336
    %v341 = vpack.c.bf16 %v339, %v338
    %v342 = vld [vmem:[%s7] sm:$0xf]
    %v343 = vld [vmem:[%s7 + $0x4] sm:$0xf]
    %v346 = vunpack.c.l.b16 %v342
    %v347 = vunpack.c.l.b16 %v343
    %v348 = vpack.c.b16 %v347, %v346
    %v350 = vsel %vm181, %v348, 0
    %352 = vmatprep.subr.bf16.mxu0 0
    %353 = vmatpush1.bf16.msra.mxu0 %v340
    %354 = vmatprep.subr.bf16.mxu0 0
    %355 = vmatpush1.bf16.msra.mxu0 %v341
    %356 = vmatprep.subr.bf16.mxu0 0
    %357 = vmatpush1.bf16.msra.mxu0 0
    %358 = vmatprep.subr.bf16.mxu0 0
    %359 = vmatpush1.bf16.msra.mxu0 0
    %360 = vmatprep.subr.bf16.mxu0 0
    %361 = vmatpush1.bf16.msra.mxu0 0
    %362 = vmatprep.subr.bf16.mxu0 0
    %363 = vmatpush1.bf16.msra.mxu0 0
    %364 = vmatprep.subr.bf16.mxu0 0
    %365 = vmatpush1.bf16.msra.mxu0 0
    %366 = vmatprep.subr.bf16.mxu0 0
    %367 = vmatpush1.bf16.msra.mxu0 0
    %368 = vmatprep.subr.bf16.mxu0 0
    %369 = vmatpush1.bf16.msra.mxu0 0
    %370 = vmatprep.subr.bf16.mxu0 0
    %371 = vmatpush1.bf16.msra.mxu0 0
    %372 = vmatprep.subr.bf16.mxu0 0
    %373 = vmatpush1.bf16.msra.mxu0 0
    %374 = vmatprep.subr.bf16.mxu0 0
    %375 = vmatpush1.bf16.msra.mxu0 0
    %376 = vmatprep.subr.bf16.mxu0 0
    %377 = vmatpush1.bf16.msra.mxu0 0
    %378 = vmatprep.subr.bf16.mxu0 0
    %379 = vmatpush1.bf16.msra.mxu0 0
    %380 = vmatprep.subr.bf16.mxu0 0
    %381 = vmatpush1.bf16.msra.mxu0 0
    %382 = vmatprep.subr.bf16.mxu0 0
    %383 = vmatpush1.bf16.msra.mxu0 0
    %384 = vmatprep.mubr.bf16.mxu0 0
    %385 = vmatmul.mubr.bf16.gmra.mrb[0].mxu0 %v350
    %v386 = vpop.f32.mrb[0].mxu0
    %v387 = vadd.f32 0.0, %v386
    %v388 = vpop.f32.mrb[0].mxu0
    %v389 = vpop.f32.mrb[0].mxu0
    %v390 = vpop.f32.mrb[0].mxu0
    %391 = vdwg.mxu0
    %s392 = sld [smem:[#allocation2]]
    %v393 = vstv %s392
    %v394 = vadd.f32 %v387, %v393
    %395 = vst [vmem:[#allocation3] sm:$0x1] %v394
    // Predicated region
    $region38: #{tpu_custom_call.1} parent=1 // pred_check
      _
    $region39: #{tpu_custom_call.1} parent=1 // pred_check_branch
      %397 = sbr.rel (0) target = $region41
    $region40: #{tpu_custom_call.1} parent=1 // pred_region
      %s399 = ssub.s32 16, 16
      %400 = vsyncadd [#allocation4], %s399
      %s402 = sshll.u32 [#allocation3], 4
      %s403 = int_to_ptr.vmem [resolvable:$true] %s402
      %405 = dma.vmem_to_hbm [thread:$0]  %s403, 16, %s9, [#allocation4]
    $region41: #{tpu_custom_call.1} parent=1 // pred_fallthru
      _
    // Predicated region
    $region42: #{tpu_custom_call.1} parent=1 // pred_check
      _
    $region43: #{tpu_custom_call.1} parent=1 // pred_check_branch
      %407 = sbr.rel (0) target = $region45
    $region44: #{tpu_custom_call.1} parent=1 // pred_region
      %408 = dma.done [#allocation4], 16
    $region45: #{tpu_custom_call.1} parent=1 // pred_fallthru
      _
    %409 = vsyncpa [#allocation4], 1

</llo_original>
